<compile_context>
chip_gen: v6e
topology: v6e:2x2x1
jax: 0.10.0
libtpu: 0.0.40
codegen_flags: <defaults>
</compile_context>

<pallas_src>
import functools

import jax
import jax.numpy as jnp
from jax.experimental import pallas as pl
from jax.experimental.pallas import tpu as pltpu


def _round_up(x, m):
    return ((x + m - 1) // m) * m


# ---------------------------------------------------------------------------
# Kernel 1: softmax over the class axis, lane-dense (C, N) layout.
# ---------------------------------------------------------------------------
def _softmax_cn_kernel(logits_ref, probs_ref):
    x = logits_ref[...].astype(jnp.float32)               # (C, TJ)
    m = jnp.max(x, axis=0, keepdims=True)                 # (1, TJ)
    e = jnp.exp(x - m)
    probs_ref[...] = e / jnp.sum(e, axis=0, keepdims=True)


# ---------------------------------------------------------------------------
# Kernel 2: tiled pairwise Mann-Whitney accumulation.
#   grid = (N_pad_r // TI, N_pad_c // TJ); out[i] accumulates over the j axis.
# ---------------------------------------------------------------------------
def _auroc_pair_kernel(probs_rows_ref, pos_ref, probs_cols_ref, neg_ref,
                       out_ref, *, num_classes):
    j = pl.program_id(1)

    @pl.when(j == 0)
    def _():
        out_ref[...] = jnp.zeros_like(out_ref)

    neg_mat = neg_ref[...]                                 # (TJ, 128), 0/1
    ti = probs_rows_ref.shape[0]
    acc = jnp.zeros((ti, 1), jnp.float32)                  # per-row partial

    # num_classes is small and static -> unrolled python loop.
    for c in range(num_classes):
        s_col = probs_rows_ref[:, c:c + 1]                 # (TI, 1)
        s_row = probs_cols_ref[c:c + 1, :]                 # (1, TJ)
        gt = (s_col > s_row).astype(jnp.float32)
        eq = (s_col == s_row).astype(jnp.float32)
        cmp = gt + 0.5 * eq                                # (TI, TJ)
        # Lane-direction reduction on the MXU; column c of neg_mat holds the
        # 0/1 "negative" indicator for class c (remaining columns are zeros).
        v = jnp.dot(cmp, neg_mat,
                    preferred_element_type=jnp.float32)    # (TI, 128)
        # pos_ref already carries the 1/(n_pos*n_neg) normalizer per class.
        acc = acc + pos_ref[:, c:c + 1] * v[:, c:c + 1]

    out_ref[...] += jnp.sum(acc, axis=0, keepdims=True)


# ---------------------------------------------------------------------------
# Wrapper
# ---------------------------------------------------------------------------
def multi_auroc(logits, labels, num_classes, *, ti_max=256, tj_max=1024):
    """logits: (N, C) float, labels: (N,) int. Returns shape-(1,) float32."""
    n, c = logits.shape
    assert c == num_classes
    assert num_classes <= 128
    assert ti_max % 8 == 0 and tj_max % 128 == 0
    labels = labels.astype(jnp.int32)

    # Tile sizes / padded extents (rows -> sublanes, cols -> lanes).
    ti = min(ti_max, _round_up(n, 8))
    n_pad_r = _round_up(n, ti)
    tj = min(tj_max, _round_up(n, 128))
    n_pad_c = _round_up(n, tj)
    g_i = n_pad_r // ti
    g_j = n_pad_c // tj

    # --- softmax once, lane-dense (C, N_pad_c); DMA in original dtype. -----
    logits_cn = jnp.pad(jnp.transpose(logits), ((0, 0), (0, n_pad_c - n)))
    probs_cols = pl.pallas_call(
        _softmax_cn_kernel,
        out_shape=jax.ShapeDtypeStruct((num_classes, n_pad_c), jnp.float32),
        grid=(g_j,),
        in_specs=[pl.BlockSpec((num_classes, tj), lambda j: (0, j))],
        out_specs=pl.BlockSpec((num_classes, tj), lambda j: (0, j)),
        compiler_params=pltpu.CompilerParams(
            dimension_semantics=("parallel",)),
    )(logits_cn)

    # Row-layout view of the SAME probs (bitwise-identical values, glue only).
    probs_rows = jnp.pad(jnp.transpose(probs_cols[:, :n]),
                         ((0, n_pad_r - n), (0, 0)))        # (N_pad_r, C)

    # --- per-class masks & normalizers (wrapper glue; O(N*C)). -------------
    classes = jnp.arange(num_classes, dtype=jnp.int32)
    onehot = (labels[:, None] == classes[None, :]).astype(jnp.float32)  # (N,C)
    n_pos = jnp.sum(onehot, axis=0)
    n_neg = jnp.float32(n) - n_pos
    inv = 1.0 / (n_pos * n_neg)          # inf -> reproduces reference 0/0 NaN
    pos_scaled = jnp.pad(onehot * inv[None, :], ((0, n_pad_r - n), (0, 0)))
    neg_w = 128                          # lane-dense MXU operand width
    neg_mat = jnp.pad(1.0 - onehot,
                      ((0, n_pad_c - n), (0, neg_w - num_classes)))

    # --- tiled pairwise accumulation. ---------------------------------------
    out = pl.pallas_call(
        functools.partial(_auroc_pair_kernel, num_classes=num_classes),
        out_shape=jax.ShapeDtypeStruct((g_i, 8, 128), jnp.float32),
        grid=(g_i, g_j),
        in_specs=[
            pl.BlockSpec((ti, num_classes), lambda i, j: (i, 0)),  # probs rows
            pl.BlockSpec((ti, num_classes), lambda i, j: (i, 0)),  # pos * inv
            pl.BlockSpec((num_classes, tj), lambda i, j: (0, j)),  # probs cols
            pl.BlockSpec((tj, neg_w), lambda i, j: (j, 0)),        # neg mask
        ],
        out_specs=pl.BlockSpec((1, 8, 128), lambda i, j: (i, 0, 0)),
        compiler_params=pltpu.CompilerParams(
            dimension_semantics=("parallel", "arbitrary"),
            vmem_limit_bytes=32 * 1024 * 1024),
    )(probs_rows, pos_scaled, probs_cols, neg_mat)

    total = jnp.sum(out[:, 0, 0])        # tiny cross-row-tile combine (glue)
    return jnp.reshape(total / jnp.float32(num_classes), (1,))


def _reference(logits, labels, num_classes):
    """Pure-JAX reference of the same Mann-Whitney formulation."""
    probs = jax.nn.softmax(logits.astype(jnp.float32), axis=1)
    total = 0.0
    for c in range(num_classes):
        s = probs[:, c]
        pos = (labels == c)
        neg = ~pos
        cmp = (s[:, None] > s[None, :]).astype(jnp.float32) \
            + 0.5 * (s[:, None] == s[None, :]).astype(jnp.float32)
        w = pos[:, None].astype(jnp.float32) * neg[None, :].astype(jnp.float32)
        total = total + jnp.sum(cmp * w) / (jnp.sum(pos) * jnp.sum(neg))
    return jnp.reshape(total / num_classes, (1,))


if __name__ == "__main__":
    num_classes = 4

    # --- small sanity case (single-tile grid) -------------------------------
    n = 16
    key = jax.random.PRNGKey(0)
    k_logits, k_perm = jax.random.split(key)
    logits = jax.random.normal(k_logits, (n, num_classes), dtype=jnp.float32)
    # Each class appears at least once (avoids the NaN edge case).
    labels = jax.random.permutation(
        k_perm, jnp.arange(n, dtype=jnp.int32) % num_classes)

    out = jax.block_until_ready(multi_auroc(logits, labels, num_classes))
    ref = _reference(logits, labels, num_classes)
    assert out.shape == (1,)
    assert jnp.allclose(out, ref, atol=1e-5), (out, ref)

    # --- small multi-tile case (exercises the (i, j) grid and padding) ------
    n2 = 200
    k2a, k2b = jax.random.split(jax.random.PRNGKey(1))
    logits2 = jax.random.normal(k2a, (n2, num_classes), dtype=jnp.float32)
    labels2 = jax.random.randint(k2b, (n2,), 0, num_classes, dtype=jnp.int32)
    out2 = jax.block_until_ready(
        multi_auroc(logits2, labels2, num_classes, ti_max=64, tj_max=128))
    ref2 = _reference(logits2, labels2, num_classes)
    assert jnp.allclose(out2, ref2, atol=1e-5), (out2, ref2)

    print("KERNEL_OK")
</pallas_src>

<mosaic_0001>
module attributes {stable_mosaic.version = 11 : i64} {
  func.func @_softmax_cn_kernel(%arg0: i32, %arg1: memref<4x128xf32, #tpu.memory_space<vmem>>, %arg2: memref<4x128xf32, #tpu.memory_space<vmem>>) attributes {dimension_semantics = [#tpu.dimension_semantics<parallel>], iteration_bounds = array<i64: 1>, scalar_prefetch = 0 : i64, scratch_operands = 0 : i64, tpu.core_type = #tpu.core_type<tc>, window_params = [{transform_indices = @transform_0, window_bounds = array<i64: 4, 128>}, {transform_indices = @transform_1, window_bounds = array<i64: 4, 128>}]} {
    %c0 = arith.constant 0 : index
    %c0_0 = arith.constant 0 : index
    %0 = vector.load %arg1[%c0, %c0_0] : memref<4x128xf32, #tpu.memory_space<vmem>>, vector<4x128xf32>
    %cst = arith.constant dense<0xFF800000> : vector<128xf32>
    %1 = vector.multi_reduction <maximumf>, %0, %cst [0] : vector<4x128xf32> to vector<128xf32>
    %2 = vector.shape_cast %1 : vector<128xf32> to vector<1x128xf32>
    %3 = vector.broadcast %2 : vector<1x128xf32> to vector<4x128xf32>
    %4 = arith.subf %0, %3 : vector<4x128xf32>
    %5 = math.exp %4 : vector<4x128xf32>
    %cst_1 = arith.constant dense<0.000000e+00> : vector<128xf32>
    %6 = vector.multi_reduction <add>, %5, %cst_1 [0] : vector<4x128xf32> to vector<128xf32>
    %7 = vector.shape_cast %6 : vector<128xf32> to vector<1x128xf32>
    %8 = vector.broadcast %7 : vector<1x128xf32> to vector<4x128xf32>
    %9 = arith.divf %5, %8 : vector<4x128xf32>
    %c0_2 = arith.constant 0 : index
    %c0_3 = arith.constant 0 : index
    %10 = vector.load %arg2[%c0_2, %c0_3] : memref<4x128xf32, #tpu.memory_space<vmem>>, vector<4x128xf32>
    tpu.vector_store %arg2[%c0_2, %c0_3], %9 {strides = array<i32>} : memref<4x128xf32, #tpu.memory_space<vmem>>, vector<4x128xf32>,
    return
  }
  func.func @transform_0(%arg0: i32) -> (i32, i32) {
    %c0_i32 = arith.constant 0 : i32
    %c0_i32_0 = arith.constant 0 : i32
    return %c0_i32, %arg0 : i32, i32
  }
  func.func @transform_1(%arg0: i32) -> (i32, i32) {
    %c0_i32 = arith.constant 0 : i32
    %c0_i32_0 = arith.constant 0 : i32
    return %c0_i32, %arg0 : i32, i32
  }
}

</mosaic_0001>

<llo_original>
// kernel: tpu_custom_call.1
$region0: #{tpu_custom_call.1}
  #allocation0 [shape = 'u32[]', space=smem, size = 0x4, offset = 0x4, fixed_abs, tag = 'smem constant byte address 0x4 - core index']
  #allocation1 [shape = 'u32[144,128]{1,0:T(1,128)}', space=vmem, size = 0x12000, scoped, tag = 'internal scratch']
  %s0 = inlined_call_operand.hbm [shape: f32[4,128], index: 0, kind: input, shape index: {}]
  %s1 = inlined_call_operand.hbm [shape: f32[4,128], index: 1, kind: output, shape index: {}]
  %s2 = sld [smem:[#allocation0]]
  $region18: #{tpu_custom_call.1} parent=0
    _
  %s4 = ssub.s32 1, %s2
  %s5 = scalar_select 0, %s4, %s2
  $region1: #{tpu_custom_call.1} parent=0
    #allocation2 [shape = 'u8[2048]{0}', space=vmem, size = 0x800, scoped, tag = 'input window, operand 0, single buffered']
    #allocation3 [shape = 's32[1]{0}', space=sflag, size = 0x4, scoped, tag = 'scoped memory for tpu_custom_call.1']
    #allocation4 [shape = 's32[1]{0}', space=sflag, size = 0x4, scoped, tag = 'scoped memory for tpu_custom_call.1']
    #allocation5 [shape = 'u8[2048]{0}', space=vmem, size = 0x800, scoped, tag = 'output window, operand 0, single buffered']
    %6 = vsyncpa [#allocation3], 0
    %7 = vsyncpa [#allocation4], 0
    // Predicated region
    $region2: #{tpu_custom_call.1} parent=1 // pred_check
      _
    $region3: #{tpu_custom_call.1} parent=1 // pred_check_branch
      %9 = sbr.rel (0) target = $region5
    $region4: #{tpu_custom_call.1} parent=1 // pred_region
      %s11 = ssub.s32 64, 64
      %12 = vsyncadd [#allocation3], %s11
      %s14 = sshll.u32 [#allocation2], 4
      %s15 = int_to_ptr.vmem [resolvable:$true] %s14
      %17 = dma.hbm_to_vmem [thread:$0]  %s0, 64, %s15, [#allocation3]
    $region5: #{tpu_custom_call.1} parent=1 // pred_fallthru
      _
    // Predicated region
    $region6: #{tpu_custom_call.1} parent=1 // pred_check
      _
    $region7: #{tpu_custom_call.1} parent=1 // pred_check_branch
      %19 = sbr.rel (0) target = $region9
    $region8: #{tpu_custom_call.1} parent=1 // pred_region
      %20 = dma.done [#allocation3], 64
    $region9: #{tpu_custom_call.1} parent=1 // pred_fallthru
      _
    %v21 = vld [vmem:[#allocation2] sm:$0xf]
    %vm22 = vcmask 1043456
    %v23 = vsel %vm22, %v21, -inf
    %v24 = vrot.slane %v23, 4
    %v25 = vmax.f32 %v23, %v24
    %v26 = vrot.slane %v25, 2
    %v27 = vmax.f32 %v25, %v26
    %v28 = vrot.slane %v27, 1
    %v29 = vmax.f32 %v27, %v28
    %v30 = vsub.f32 %v21, %v29
    %v31 = vmul.f32 %v30, 1.442695
    %v32 = vpow.pop %v31
    %v33 = vsel %vm22, %v32, 0.0
    %v34 = vrot.slane %v33, 4
    %v35 = vadd.f32 %v33, %v34
    %v36 = vrot.slane %v35, 2
    %v37 = vadd.f32 %v35, %v36
    %v38 = vrot.slane %v37, 1
    %v39 = vadd.f32 %v37, %v38
    %v40 = vrcp.pop %v39
    %v41 = vmul.f32 %v32, %v40
    %42 = vst [vmem:[#allocation5] sm:$0xf] %v41
    // Predicated region
    $region10: #{tpu_custom_call.1} parent=1 // pred_check
      _
    $region11: #{tpu_custom_call.1} parent=1 // pred_check_branch
      %44 = sbr.rel (0) target = $region13
    $region12: #{tpu_custom_call.1} parent=1 // pred_region
      %s46 = ssub.s32 64, 64
      %47 = vsyncadd [#allocation4], %s46
      %s49 = sshll.u32 [#allocation5], 4
      %s50 = int_to_ptr.vmem [resolvable:$true] %s49
      %52 = dma.vmem_to_hbm [thread:$0]  %s50, 64, %s1, [#allocation4]
    $region13: #{tpu_custom_call.1} parent=1 // pred_fallthru
      _
    // Predicated region
    $region14: #{tpu_custom_call.1} parent=1 // pred_check
      _
    $region15: #{tpu_custom_call.1} parent=1 // pred_check_branch
      %54 = sbr.rel (0) target = $region17
    $region16: #{tpu_custom_call.1} parent=1 // pred_region
      %55 = dma.done [#allocation4], 64
    $region17: #{tpu_custom_call.1} parent=1 // pred_fallthru
      _
    %56 = vsyncpa [#allocation3], 1
    %57 = vsyncpa [#allocation4], 1

</llo_original>
